<compile_context>
chip_gen: v6e
topology: v6e:2x2x1
jax: 0.10.0
libtpu: 0.0.40
codegen_flags: <defaults>
</compile_context>

<pallas_src>
import jax
import jax.numpy as jnp
from jax import lax
from jax.experimental import pallas as pl
from jax.experimental.pallas import tpu as pltpu


def _round_up(x: int, m: int) -> int:
    return ((x + m - 1) // m) * m


# ---------------------------------------------------------------------------
# adjoint=False : outputs = matrix @ inputs   ([num_rows,num_cols] @ [num_cols,rank])
# Grid: (row-tiles "parallel", K=num_cols tiles "arbitrary").
# ---------------------------------------------------------------------------
def _matmul_kernel(m_ref, x_ref, o_ref, acc_ref):
    k = pl.program_id(1)

    @pl.when(k == 0)
    def _():
        acc_ref[...] = jnp.zeros_like(acc_ref)

    acc_ref[...] += jnp.dot(
        m_ref[...], x_ref[...], preferred_element_type=jnp.float32
    )

    @pl.when(k == pl.num_programs(1) - 1)
    def _():
        o_ref[...] = acc_ref[...].astype(o_ref.dtype)


def _matrix_matmul(matrix: jax.Array, inputs: jax.Array, *, tm: int, tk: int) -> jax.Array:
    num_rows, num_cols = matrix.shape
    rank = inputs.shape[-1]
    out_dtype = jnp.result_type(matrix.dtype, inputs.dtype)

    TM = num_rows if num_rows <= tm else tm            # full dim, or multiple of 8
    TK = num_cols if num_cols <= tk else tk            # full dim, or multiple of 128
    rows_p = _round_up(num_rows, TM)
    cols_p = _round_up(num_cols, TK)

    if rows_p != num_rows or cols_p != num_cols:
        matrix = jnp.pad(matrix, ((0, rows_p - num_rows), (0, cols_p - num_cols)))
    if cols_p != num_cols:
        inputs = jnp.pad(inputs, ((0, cols_p - num_cols), (0, 0)))

    out = pl.pallas_call(
        _matmul_kernel,
        out_shape=jax.ShapeDtypeStruct((rows_p, rank), out_dtype),
        grid_spec=pltpu.PrefetchScalarGridSpec(
            num_scalar_prefetch=0,
            grid=(rows_p // TM, cols_p // TK),          # (parallel rows, reduction K last)
            in_specs=[
                pl.BlockSpec((TM, TK), lambda i, k: (i, k)),
                pl.BlockSpec((TK, rank), lambda i, k: (k, 0)),
            ],
            out_specs=pl.BlockSpec((TM, rank), lambda i, k: (i, 0)),
            scratch_shapes=[pltpu.VMEM((TM, rank), jnp.float32)],
        ),
        compiler_params=pltpu.CompilerParams(
            dimension_semantics=("parallel", "arbitrary"),
            vmem_limit_bytes=32 * 1024 * 1024,
        ),
    )(matrix, inputs)
    return out[:num_rows]


# ---------------------------------------------------------------------------
# adjoint=True : outputs = matrix^T @ inputs
# Kernel computes the transposed result y = inputs^T @ matrix -> [rank, num_cols]
# (lane-dense output, MXU-natural contraction over K = num_rows), accumulating over
# K-tiles in an f32 VMEM scratch.  The wrapper transposes back to [num_cols, rank].
# ---------------------------------------------------------------------------
def _adjoint_kernel(m_ref, x_ref, o_ref, acc_ref):
    k = pl.program_id(1)

    @pl.when(k == 0)
    def _():
        acc_ref[...] = jnp.zeros_like(acc_ref)

    # partial = inputs_tile^T @ matrix_tile : contract axis 0 of both operands.
    acc_ref[...] += lax.dot_general(
        x_ref[...], m_ref[...],
        dimension_numbers=(((0,), (0,)), ((), ())),
        preferred_element_type=jnp.float32,
    )

    @pl.when(k == pl.num_programs(1) - 1)
    def _():
        o_ref[...] = acc_ref[...].astype(o_ref.dtype)


def _matrix_adjoint_matmul(matrix: jax.Array, inputs: jax.Array, *, tn: int, tk: int) -> jax.Array:
    num_rows, num_cols = matrix.shape
    rank = inputs.shape[-1]
    out_dtype = jnp.result_type(matrix.dtype, inputs.dtype)

    TK = num_rows if num_rows <= tk else tk            # full dim, or multiple of 8
    TN = num_cols if num_cols <= tn else tn            # full dim, or multiple of 128
    rows_p = _round_up(num_rows, TK)
    cols_p = _round_up(num_cols, TN)

    if rows_p != num_rows or cols_p != num_cols:
        matrix = jnp.pad(matrix, ((0, rows_p - num_rows), (0, cols_p - num_cols)))
    if rows_p != num_rows:
        inputs = jnp.pad(inputs, ((0, rows_p - num_rows), (0, 0)))

    out_t = pl.pallas_call(
        _adjoint_kernel,
        out_shape=jax.ShapeDtypeStruct((rank, cols_p), out_dtype),
        grid_spec=pltpu.PrefetchScalarGridSpec(
            num_scalar_prefetch=0,
            grid=(cols_p // TN, rows_p // TK),          # (parallel cols, reduction K last)
            in_specs=[
                pl.BlockSpec((TK, TN), lambda j, k: (k, j)),
                pl.BlockSpec((TK, rank), lambda j, k: (k, 0)),
            ],
            out_specs=pl.BlockSpec((rank, TN), lambda j, k: (0, j)),
            scratch_shapes=[pltpu.VMEM((rank, TN), jnp.float32)],
        ),
        compiler_params=pltpu.CompilerParams(
            dimension_semantics=("parallel", "arbitrary"),
            vmem_limit_bytes=32 * 1024 * 1024,
        ),
    )(matrix, inputs)
    # Back to the module's [num_cols, rank] layout (tiny array; cheap XLA transpose).
    return out_t[:, :num_cols].T


def matrix_forward(matrix: jax.Array, inputs: jax.Array, adjoint: bool = True,
                   *, tm: int = 512, tn: int = 512, tk: int = 512) -> jax.Array:
    """Pallas equivalent of Matrix.forward."""
    if adjoint:
        return _matrix_adjoint_matmul(matrix, inputs, tn=tn, tk=tk)
    return _matrix_matmul(matrix, inputs, tm=tm, tk=tk)


if __name__ == "__main__":
    # Small shapes; tile sizes shrunk so the grid / accumulator / padding paths
    # are actually exercised (num_rows=200 is deliberately not a tile multiple).
    num_rows, num_cols, rank = 200, 256, 8

    key = jax.random.PRNGKey(0)
    k_m, k_xa, k_xn = jax.random.split(key, 3)

    # Module __init__ uses zeros; use random values of the same shape so the
    # matmul is meaningfully exercised.
    matrix = jax.random.normal(k_m, (num_rows, num_cols), dtype=jnp.float32)

    # adjoint=True path: inputs [num_rows, rank] -> outputs [num_cols, rank]
    x_adj = jax.random.normal(k_xa, (num_rows, rank), dtype=jnp.float32)
    out_adj = jax.block_until_ready(
        matrix_forward(matrix, x_adj, adjoint=True, tn=128, tk=64))
    ref_adj = matrix.T @ x_adj
    assert out_adj.shape == (num_cols, rank)
    assert jnp.allclose(out_adj, ref_adj, atol=1e-4, rtol=1e-4)

    # adjoint=False path: inputs [num_cols, rank] -> outputs [num_rows, rank]
    x_no = jax.random.normal(k_xn, (num_cols, rank), dtype=jnp.float32)
    out_no = jax.block_until_ready(
        matrix_forward(matrix, x_no, adjoint=False, tm=64, tk=128))
    ref_no = matrix @ x_no
    assert out_no.shape == (num_rows, rank)
    assert jnp.allclose(out_no, ref_no, atol=1e-4, rtol=1e-4)

    print("KERNEL_OK")
</pallas_src>

<mosaic_0001>
module attributes {stable_mosaic.version = 11 : i64} {
  func.func @_adjoint_kernel(%arg0: i32, %arg1: i32, %arg2: memref<64x128xf32, #tpu.memory_space<vmem>>, %arg3: memref<64x8xf32, #tpu.memory_space<vmem>>, %arg4: memref<8x128xf32, #tpu.memory_space<vmem>>, %arg5: memref<8x128xf32, #tpu.memory_space<vmem>>) attributes {dimension_semantics = [#tpu.dimension_semantics<parallel>, #tpu.dimension_semantics<arbitrary>], iteration_bounds = array<i64: 2, 4>, scalar_prefetch = 0 : i64, scratch_operands = 1 : i64, tpu.core_type = #tpu.core_type<tc>, window_params = [{transform_indices = @transform_0, window_bounds = array<i64: 64, 128>}, {transform_indices = @transform_1, window_bounds = array<i64: 64, 8>}, {transform_indices = @transform_2, window_bounds = array<i64: 8, 128>}]} {
    %c0_i32 = arith.constant 0 : i32
    %0 = arith.cmpi eq, %arg1, %c0_i32 : i32
    %1 = arith.extui %0 : i1 to i32
    %c0_i32_0 = arith.constant 0 : i32
    %2 = arith.cmpi ne, %1, %c0_i32_0 : i32
    scf.if %2 {
      %cst_9 = arith.constant 0.000000e+00 : f32
      %12 = vector.broadcast %cst_9 : f32 to vector<8x128xf32>
      %c0_10 = arith.constant 0 : index
      %c0_11 = arith.constant 0 : index
      %13 = vector.load %arg5[%c0_10, %c0_11] : memref<8x128xf32, #tpu.memory_space<vmem>>, vector<8x128xf32>
      tpu.vector_store %arg5[%c0_10, %c0_11], %12 {strides = array<i32>} : memref<8x128xf32, #tpu.memory_space<vmem>>, vector<8x128xf32>,
    } else {
    }
    %c0 = arith.constant 0 : index
    %c0_1 = arith.constant 0 : index
    %3 = vector.load %arg5[%c0, %c0_1] : memref<8x128xf32, #tpu.memory_space<vmem>>, vector<8x128xf32>
    %c0_2 = arith.constant 0 : index
    %c0_3 = arith.constant 0 : index
    %4 = vector.load %arg3[%c0_2, %c0_3] : memref<64x8xf32, #tpu.memory_space<vmem>>, vector<64x8xf32>
    %c0_4 = arith.constant 0 : index
    %c0_5 = arith.constant 0 : index
    %5 = vector.load %arg2[%c0_4, %c0_5] : memref<64x128xf32, #tpu.memory_space<vmem>>, vector<64x128xf32>
    %cst = arith.constant dense<0.000000e+00> : vector<8x128xf32>
    %6 = tpu.matmul %4, %5, %cst {dimension_numbers = #tpu.dot_dimension_numbers<[0], [0], [1], [1], [0, 1, 1, 1], [], []>} : vector<64x8xf32>, vector<64x128xf32>, vector<8x128xf32> -> vector<8x128xf32>
    %7 = arith.addf %3, %6 : vector<8x128xf32>
    %c0_6 = arith.constant 0 : index
    %c0_7 = arith.constant 0 : index
    %8 = vector.load %arg5[%c0_6, %c0_7] : memref<8x128xf32, #tpu.memory_space<vmem>>, vector<8x128xf32>
    tpu.vector_store %arg5[%c0_6, %c0_7], %7 {strides = array<i32>} : memref<8x128xf32, #tpu.memory_space<vmem>>, vector<8x128xf32>,
    %c3_i32 = arith.constant 3 : i32
    %9 = arith.cmpi eq, %arg1, %c3_i32 : i32
    %10 = arith.extui %9 : i1 to i32
    %c0_i32_8 = arith.constant 0 : i32
    %11 = arith.cmpi ne, %10, %c0_i32_8 : i32
    scf.if %11 {
      %c0_9 = arith.constant 0 : index
      %c0_10 = arith.constant 0 : index
      %12 = vector.load %arg5[%c0_9, %c0_10] : memref<8x128xf32, #tpu.memory_space<vmem>>, vector<8x128xf32>
      %c0_11 = arith.constant 0 : index
      %c0_12 = arith.constant 0 : index
      %13 = vector.load %arg4[%c0_11, %c0_12] : memref<8x128xf32, #tpu.memory_space<vmem>>, vector<8x128xf32>
      tpu.vector_store %arg4[%c0_11, %c0_12], %12 {strides = array<i32>} : memref<8x128xf32, #tpu.memory_space<vmem>>, vector<8x128xf32>,
    } else {
    }
    return
  }
  func.func @transform_0(%arg0: i32, %arg1: i32) -> (i32, i32) {
    %c0_i32 = arith.constant 0 : i32
    return %arg1, %arg0 : i32, i32
  }
  func.func @transform_1(%arg0: i32, %arg1: i32) -> (i32, i32) {
    %c0_i32 = arith.constant 0 : i32
    %c0_i32_0 = arith.constant 0 : i32
    return %arg1, %c0_i32 : i32, i32
  }
  func.func @transform_2(%arg0: i32, %arg1: i32) -> (i32, i32) {
    %c0_i32 = arith.constant 0 : i32
    %c0_i32_0 = arith.constant 0 : i32
    return %c0_i32, %arg0 : i32, i32
  }
}

</mosaic_0001>

<llo_original>
// kernel: tpu_custom_call.1
$region0: #{tpu_custom_call.1}
  #allocation0 [shape = 'u32[]', space=smem, size = 0x4, offset = 0x4, fixed_abs, tag = 'smem constant byte address 0x4 - core index']
  #allocation1 [shape = 'u32[144,128]{1,0:T(1,128)}', space=vmem, size = 0x12000, scoped, tag = 'internal scratch']
  #allocation2 [shape = 'f32[8,128]{1,0:T(8,128)}', space=vmem, size = 0x1000, scoped, tag = 'scratch operand']
  %s0 = inlined_call_operand.hbm [shape: f32[256,256], index: 0, kind: input, shape index: {}]
  %s1 = inlined_call_operand.vmem [shape: f32[256,8], index: 1, kind: input, shape index: {}]
  %s2 = inlined_call_operand.hbm [shape: f32[8,256], index: 2, kind: output, shape index: {}]
  %s3 = sld [smem:[#allocation0]]
  $region53: #{tpu_custom_call.1} parent=0
    _
  %s5 = ssub.s32 1, %s3
  %s6 = scalar_select 0, %s5, %s3
  $region1: #{tpu_custom_call.1} parent=0
    #allocation3 [shape = 'u8[65536]{0}', space=vmem, size = 0x10000, scoped, tag = 'input window, operand 0']
    #allocation4 [shape = 's32[2]{0}', space=sflag, size = 0x8, scoped, tag = 'scoped memory for tpu_custom_call.1']
    #allocation5 [shape = 's32[2]{0}', space=sflag, size = 0x8, scoped, tag = 'scoped memory for tpu_custom_call.1']
    #allocation6 [shape = 'u8[8192]{0}', space=vmem, size = 0x2000, scoped, tag = 'output window, operand 0']
    %7 = vsyncpa [#allocation4], 0
    %s8 = scalar_lea.sflag [#allocation4], 1
    %9 = vsyncpa %s8, 0
    %10 = vsyncpa [#allocation5], 0
    %s11 = scalar_lea.sflag [#allocation5], 1
    %12 = vsyncpa %s11, 0
    loop: start=0, step=1, limit=10
    $region2: #{tpu_custom_call.1} parent=1 // loop_pre_header
      _
    $region3: #{tpu_custom_call.1} parent=1 // loop_header
      %s14 = sphi 0, %s18
      %p15 = scmp.ge.s32.totalorder %s14, 10
      %s21 = sphi 0, %s33
      %s22 = sphi 0, %s29
      %s23 = sphi 0, %s21
      %s24 = sphi 0, %s22
      %s25 = sphi 0, %s23
      %s26 = sphi 0, %s24
      %s38 = sphi 0, %s40
      %s41 = sphi 0, %s38
      %s42 = sphi 0, %s41
      %s58 = sphi 0, %s42
      %s64 = sphi 0, %s66
      %s67 = sphi 0, %s64
      %s68 = sphi 0, %s67
      %s84 = sphi 0, %s68
      %s90 = sphi 0, %s92
      %s93 = sphi 0, %s90
      %s94 = sphi 0, %s93
      %s110 = sphi 0, %s94
    $region4: #{tpu_custom_call.1} parent=1 // loop_header_branch
      %17 = sbr.rel (%p15) target = $region8
    $region5: #{tpu_custom_call.1} parent=1 // loop_body
      %s19 = ssub.s32 %s14, 1
      %s20 = ssub.s32 %s14, 2
      %s27 = sadd.s32 1, %s22
      %p28 = scmp.ge.s32.totalorder %s27, 4
      %s29 = scalar_select %p28, 0, %s27
      %s30 = sadd.s32 1, %s21
      %s31 = scalar_select %p28, %s30, %s21
      %p32 = scmp.ge.s32.totalorder %s31, 2
      %s33 = scalar_select %p32, 0, %s31
      %s34 = ssub.s32 %s22, %s29
      %s35 = ssub.s32 %s21, %s33
      %s36 = sor.u32 %s34, %s35
      %p37 = scmp.eq.s32.totalorder %s36, 0
      %s39 = sadd.s32 %s38, 1
      %s40 = scalar_select %p37, %s38, %s39
      %p43 = pneg %p37
      %p44 = scmp.eq.s32.totalorder %s14, 7
      %p45 = por %p43, %p44
      %p46 = scmp.ne.s32.totalorder %s38, %s41
      %p47 = scmp.eq.s32.totalorder %s14, 0
      %p48 = por %p46, %p47
      %p49 = scmp.ne.s32.totalorder %s38, %s41
      %p50 = scmp.eq.s32.totalorder %s19, 7
      %p51 = por %p49, %p50
      %p52 = scmp.ne.s32.totalorder %s41, %s42
      %p53 = scmp.eq.s32.totalorder %s19, 0
      %p54 = por %p52, %p53
      %p55 = scmp.ne.s32.totalorder %s41, %s42
      %p56 = scmp.eq.s32.totalorder %s20, 7
      %p57 = por %p55, %p56
      %p59 = scmp.ne.s32.totalorder %s42, %s58
      %p60 = scmp.eq.s32.totalorder %s20, 0
      %p61 = por %p59, %p60
      %s62 = ssub.s32 %s22, %s29
      %p63 = scmp.eq.s32.totalorder %s62, 0
      %s65 = sadd.s32 %s64, 1
      %s66 = scalar_select %p63, %s64, %s65
      %p69 = pneg %p63
      %p70 = scmp.eq.s32.totalorder %s14, 7
      %p71 = por %p69, %p70
      %p72 = scmp.ne.s32.totalorder %s64, %s67
      %p73 = scmp.eq.s32.totalorder %s14, 0
      %p74 = por %p72, %p73
      %p75 = scmp.ne.s32.totalorder %s64, %s67
      %p76 = scmp.eq.s32.totalorder %s19, 7
      %p77 = por %p75, %p76
      %p78 = scmp.ne.s32.totalorder %s67, %s68
      %p79 = scmp.eq.s32.totalorder %s19, 0
      %p80 = por %p78, %p79
      %p81 = scmp.ne.s32.totalorder %s67, %s68
      %p82 = scmp.eq.s32.totalorder %s20, 7
      %p83 = por %p81, %p82
      %p85 = scmp.ne.s32.totalorder %s68, %s84
      %p86 = scmp.eq.s32.totalorder %s20, 0
      %p87 = por %p85, %p86
      %s88 = ssub.s32 %s21, %s33
      %p89 = scmp.eq.s32.totalorder %s88, 0
      %s91 = sadd.s32 %s90, 1
      %s92 = scalar_select %p89, %s90, %s91
      %p95 = pneg %p89
      %p96 = scmp.eq.s32.totalorder %s14, 7
      %p97 = por %p95, %p96
      %p98 = scmp.ne.s32.totalorder %s90, %s93
      %p99 = scmp.eq.s32.totalorder %s14, 0
      %p100 = por %p98, %p99
      %p101 = scmp.ne.s32.totalorder %s90, %s93
      %p102 = scmp.eq.s32.totalorder %s19, 7
      %p103 = por %p101, %p102
      %p104 = scmp.ne.s32.totalorder %s93, %s94
      %p105 = scmp.eq.s32.totalorder %s19, 0
      %p106 = por %p104, %p105
      %p107 = scmp.ne.s32.totalorder %s93, %s94
      %p108 = scmp.eq.s32.totalorder %s20, 7
      %p109 = por %p107, %p108
      %p111 = scmp.ne.s32.totalorder %s94, %s110
      %p112 = scmp.eq.s32.totalorder %s20, 0
      %p113 = por %p111, %p112
      %p114 = scmp.le.s32.totalorder 1, %s14
      %p115 = scmp.lt.s32.totalorder %s14, 9
      %p116 = pnand %p114, %p115
      %p117 = pneg %p116
      // Predicated region
      $region9: #{tpu_custom_call.1} parent=5 // pred_check
        _
      $region10: #{tpu_custom_call.1} parent=5 // pred_check_branch
        %119 = sbr.rel (%p116) target = $region12
      $region11: #{tpu_custom_call.1} parent=5 // pred_region
        %s120 = ssub.s32 %s14, 1
      $region12: #{tpu_custom_call.1} parent=5 // pred_fallthru
        _
      %p121 = scmp.lt.s32.totalorder %s14, 8
      // Predicated region
      $region13: #{tpu_custom_call.1} parent=5 // pred_check
        %p122 = pneg %p121
      $region14: #{tpu_custom_call.1} parent=5 // pred_check_branch
        %124 = sbr.rel (%p122) target = $region16
      $region15: #{tpu_custom_call.1} parent=5 // pred_region
        // Predicated region
        $region17: #{tpu_custom_call.1} parent=15 // pred_check
          %p125 = pneg %p48
        $region18: #{tpu_custom_call.1} parent=15 // pred_check_branch
          %127 = sbr.rel (%p125) target = $region20
        $region19: #{tpu_custom_call.1} parent=15 // pred_region
          %s128 = sand.u32 %s38, 1
          %s129 = scalar_lea.sflag [#allocation4], %s128
          %s130 = sand.u32 %s38, 1
          %s131 = smul.addr %s130, 64
          %s132 = scalar_lea.vmem [#allocation3], %s131
          %s133 = smul.u32 8, %s22
          %s135 = ssub.s32 1024, 1024
          %136 = vsyncadd %s129, %s135
          %s137 = smul.addr %s133, 2
          %s138 = sadd.s32 %s21, %s137
          %s139 = smul.addr %s138, 128
          %s140 = scalar_lea.hbm %s0, %s139
          %s141 = sshll.u32 %s132, 4
          %s142 = int_to_ptr.vmem [resolvable:$true] %s141
          %147 = dma.hbm_to_vmem [thread:$0]  %s140, 1024, %s142, %s129, 256, 128, 8
        $region20: #{tpu_custom_call.1} parent=15 // pred_fallthru
          _
        // Predicated region
        $region21: #{tpu_custom_call.1} parent=15 // pred_check
          %p148 = pneg %p74
        $region22: #{tpu_custom_call.1} parent=15 // pred_check_branch
          %150 = sbr.rel (%p148) target = $region24
        $region23: #{tpu_custom_call.1} parent=15 // pred_region
          %s151 = smul.u32 8, %s22
          %p152 = scmp.lt.s32.totalorder %s151, 31
          %s153 = scalar_select %p152, %s151, 31
          %s154 = smul.addr %s153, 8
          %s155 = scalar_lea.vmem %s1, %s154
          %s156 = smul.u32 8, %s22
        $region24: #{tpu_custom_call.1} parent=15 // pred_fallthru
          _
      $region16: #{tpu_custom_call.1} parent=5 // pred_fallthru
        _
      %p157 = scmp.le.s32.totalorder 1, %s14
      %p158 = scmp.lt.s32.totalorder %s14, 9
      %p159 = pnand %p157, %p158
      %p160 = pneg %p159
      // Predicated region
      $region25: #{tpu_custom_call.1} parent=5 // pred_check
        _
      $region26: #{tpu_custom_call.1} parent=5 // pred_check_branch
        %162 = sbr.rel (%p159) target = $region28
      $region27: #{tpu_custom_call.1} parent=5 // pred_region
        %s163 = ssub.s32 %s14, 1
        %s164 = sand.u32 %s41, 1
        %s165 = scalar_lea.sflag [#allocation4], %s164
        %s166 = sand.u32 %s41, 1
        %s167 = smul.addr %s166, 64
        %s168 = scalar_lea.vmem [#allocation3], %s167
        // Predicated region
        $region29: #{tpu_custom_call.1} parent=27 // pred_check
          %p169 = pneg %p54
        $region30: #{tpu_custom_call.1} parent=27 // pred_check_branch
          %171 = sbr.rel (%p169) target = $region32
        $region31: #{tpu_custom_call.1} parent=27 // pred_region
          %172 = dma.done %s165, 1024
        $region32: #{tpu_custom_call.1} parent=27 // pred_fallthru
          _
        %s173 = sand.u32 %s41, 1
        %s174 = scalar_lea.sflag [#allocation4], %s173
        %s175 = sand.u32 %s41, 1
        %s176 = smul.addr %s175, 64
        %s177 = scalar_lea.vmem [#allocation3], %s176
        %p178 = pneg %p54
        %p179 = pneg %p51
        %s180 = smul.u32 8, %s24
        %p181 = scmp.lt.s32.totalorder %s180, 31
        %s182 = scalar_select %p181, %s180, 31
        %s183 = smul.addr %s182, 8
        %s184 = scalar_lea.vmem %s1, %s183
        %p185 = pneg %p80
        %p186 = pneg %p77
        %p187 = pneg %p106
        %p188 = pneg %p103
        %s189 = sand.u32 %s93, 1
        %s190 = scalar_lea.sflag [#allocation5], %s189
        %s191 = sand.u32 %s93, 1
        %s192 = smul.addr %s191, 8
        %s193 = scalar_lea.vmem [#allocation6], %s192
        %s194 = smul.u32 8, %s24
        %s195 = smul.u32 8, %s24
        %p196 = scmp.lt.s32.totalorder %s195, 31
        %s197 = scalar_select %p196, %s195, 31
        %s198 = smul.addr %s197, 8
        %s199 = scalar_lea.vmem %s1, %s198
        %s200 = smul.u32 8, %s24
        %p201 = scmp.eq.s32.totalorder %s24, 0
        // Predicated region
        $region33: #{tpu_custom_call.1} parent=27 // pred_check
          %p202 = pneg %p201
        $region34: #{tpu_custom_call.1} parent=27 // pred_check_branch
          %204 = sbr.rel (%p202) target = $region36
        $region35: #{tpu_custom_call.1} parent=27 // pred_region
          %205 = vst [vmem:[#allocation2] sm:$0xff] 0.0
        $region36: #{tpu_custom_call.1} parent=27 // pred_fallthru
          _
        %v206 = vld [vmem:[#allocation2] sm:$0xff]
        %v207 = vld [vmem:[%s199] sm:$0xff]
        %v208 = vld [vmem:[%s199 + $0x8] sm:$0xff]
        %v209 = vld [vmem:[%s199 + $0x10] sm:$0xff]
        %v210 = vld [vmem:[%s199 + $0x18] sm:$0xff]
        %v211 = vld [vmem:[%s199 + $0x20] sm:$0xff]
        %v212 = vld [vmem:[%s199 + $0x28] sm:$0xff]
        %v213 = vld [vmem:[%s199 + $0x30] sm:$0xff]
        %v214 = vld [vmem:[%s199 + $0x38] sm:$0xff]
        %v215 = vld [vmem:[%s168] sm:$0xff]
        %v216 = vld [vmem:[%s168 + $0x8] sm:$0xff]
        %v217 = vld [vmem:[%s168 + $0x10] sm:$0xff]
        %v218 = vld [vmem:[%s168 + $0x18] sm:$0xff]
        %v219 = vld [vmem:[%s168 + $0x20] sm:$0xff]
        %v220 = vld [vmem:[%s168 + $0x28] sm:$0xff]
        %v221 = vld [vmem:[%s168 + $0x30] sm:$0xff]
        %v222 = vld [vmem:[%s168 + $0x38] sm:$0xff]
        %223 = vxpose.xlu0.b32.start [1/16] %v207, 128
        %224 = vxpose.xlu0.b32.cont [2/16] %v208, 128
        %225 = vxpose.xlu0.b32.cont [3/16] %v209, 128
        %226 = vxpose.xlu0.b32.cont [4/16] %v210, 128
        %227 = vxpose.xlu0.b32.cont [5/16] %v211, 128
        %228 = vxpose.xlu0.b32.cont [6/16] %v212, 128
        %229 = vxpose.xlu0.b32.cont [7/16] %v213, 128
        %230 = vxpose.xlu0.b32.cont [8/16] %v214, 128
        %231 = vxpose.xlu0.b32.cont [9/16] 0.0, 128
        %232 = vxpose.xlu0.b32.cont [10/16] 0.0, 128
        %233 = vxpose.xlu0.b32.cont [11/16] 0.0, 128
        %234 = vxpose.xlu0.b32.cont [12/16] 0.0, 128
        %235 = vxpose.xlu0.b32.cont [13/16] 0.0, 128
        %236 = vxpose.xlu0.b32.cont [14/16] 0.0, 128
        %237 = vxpose.xlu0.b32.cont [15/16] 0.0, 128
        %238 = vxpose.xlu0.b32.end [16/16] 0.0, 128
        %v239 = vpop.trf.xlu0
        %v240 = vpop.trf.xlu0
        %v241 = vpop.trf.xlu0
        %v242 = vpop.trf.xlu0
        %v243 = vpop.trf.xlu0
        %v244 = vpop.trf.xlu0
        %v245 = vpop.trf.xlu0
        %v246 = vpop.trf.xlu0
        %v247 = vpop.trf.xlu0
        %v248 = vpop.trf.xlu0
        %v249 = vpop.trf.xlu0
        %v250 = vpop.trf.xlu0
        %v251 = vpop.trf.xlu0
        %v252 = vpop.trf.xlu0
        %v253 = vpop.trf.xlu0
        %v254 = vpop.trf.xlu0
        %vm255 = vcmask 523264
        %v257 = vsel %vm255, %v239, 0
        %259 = vmatprep.subr.mxu0 0.0
        %260 = vmatpush1.msra.mxu0 0.0
        %261 = vmatprep.subr.mxu0 0.0
        %262 = vmatpush1.msra.mxu0 0.0
        %263 = vmatprep.subr.mxu0 0.0
        %264 = vmatpush1.msra.mxu0 0.0
        %265 = vmatprep.subr.mxu0 0.0
        %266 = vmatpush1.msra.mxu0 0.0
        %267 = vmatprep.subr.mxu0 0.0
        %268 = vmatpush1.msra.mxu0 0.0
        %269 = vmatprep.subr.mxu0 0.0
        %270 = vmatpush1.msra.mxu0 0.0
        %271 = vmatprep.subr.mxu0 0.0
        %272 = vmatpush1.msra.mxu0 0.0
        %273 = vmatprep.subr.mxu0 0.0
        %274 = vmatpush1.msra.mxu0 0.0
        %275 = vmatprep.subr.mxu0 0.0
        %276 = vmatpush1.msra.mxu0 %v222
        %277 = vmatprep.subr.mxu0 0.0
        %278 = vmatpush1.msra.mxu0 %v221
        %279 = vmatprep.subr.mxu0 0.0
        %280 = vmatpush1.msra.mxu0 %v220
        %281 = vmatprep.subr.mxu0 0.0
        %282 = vmatpush1.msra.mxu0 %v219
        %283 = vmatprep.subr.mxu0 0.0
        %284 = vmatpush1.msra.mxu0 %v218
        %285 = vmatprep.subr.mxu0 0.0
        %286 = vmatpush1.msra.mxu0 %v217
        %287 = vmatprep.subr.mxu0 0.0
        %288 = vmatpush1.msra.mxu0 %v216
        %289 = vmatprep.subr.mxu0 0.0
        %290 = vmatpush1.msra.mxu0 %v215
        %291 = vmatprep.subr.mxu0 0.0
        %292 = vmatpush2.msra.mxu0 0.0
        %293 = vmatprep.subr.mxu0 0.0
        %294 = vmatpush2.msra.mxu0 0.0
        %295 = vmatprep.subr.mxu0 0.0
        %296 = vmatpush2.msra.mxu0 0.0
        %297 = vmatprep.subr.mxu0 0.0
        %298 = vmatpush2.msra.mxu0 0.0
        %299 = vmatprep.subr.mxu0 0.0
        %300 = vmatpush2.msra.mxu0 0.0
        %301 = vmatprep.subr.mxu0 0.0
        %302 = vmatpush2.msra.mxu0 0.0
        %303 = vmatprep.subr.mxu0 0.0
        %304 = vmatpush2.msra.mxu0 0.0
        %305 = vmatprep.subr.mxu0 0.0
        %306 = vmatpush2.msra.mxu0 0.0
        %307 = vmatprep.subr.mxu0 0.0
        %308 = vmatpush2.msra.mxu0 0.0
        %309 = vmatprep.subr.mxu0 0.0
        %310 = vmatpush2.msra.mxu0 0.0
        %311 = vmatprep.subr.mxu0 0.0
        %312 = vmatpush2.msra.mxu0 0.0
        %313 = vmatprep.subr.mxu0 0.0
        %314 = vmatpush2.msra.mxu0 0.0
        %315 = vmatprep.subr.mxu0 0.0
        %316 = vmatpush2.msra.mxu0 0.0
        %317 = vmatprep.subr.mxu0 0.0
        %318 = vmatpush2.msra.mxu0 0.0
        %319 = vmatprep.subr.mxu0 0.0
        %320 = vmatpush2.msra.mxu0 0.0
        %321 = vmatprep.subr.mxu0 0.0
        %322 = vmatpush2.msra.mxu0 0.0
        %323 = vmatprep.mubr.f32.mxu0 0.0
        %324 = vmatmul.mubr.f32.gmra.mxu0 %v257
        %v325 = vpop.f32.mrf.mxu0
        %v326 = vadd.f32 0.0, %v325
        %v327 = vpop.f32.mrf.mxu0
        %328 = vdwg.mxu0
        %v329 = vadd.f32 %v206, %v326
        %330 = vst [vmem:[#allocation2] sm:$0xff] %v329
        %p331 = scmp.eq.s32.totalorder %s24, 3
        // Predicated region
        $region37: #{tpu_custom_call.1} parent=27 // pred_check
          %p332 = pneg %p331
        $region38: #{tpu_custom_call.1} parent=27 // pred_check_branch
          %334 = sbr.rel (%p332) target = $region40
        $region39: #{tpu_custom_call.1} parent=27 // pred_region
          %v335 = vld [vmem:[#allocation2] sm:$0xff]
          %336 = vst [vmem:[%s193] sm:$0xff] %v335
        $region40: #{tpu_custom_call.1} parent=27 // pred_fallthru
          _
        %s337 = sand.u32 %s93, 1
        %s338 = scalar_lea.sflag [#allocation5], %s337
        %s339 = sand.u32 %s93, 1
        %s340 = smul.addr %s339, 8
        %s341 = scalar_lea.vmem [#allocation6], %s340
        // Predicated region
        $region41: #{tpu_custom_call.1} parent=27 // pred_check
          %p342 = pneg %p103
        $region42: #{tpu_custom_call.1} parent=27 // pred_check_branch
          %344 = sbr.rel (%p342) target = $region44
        $region43: #{tpu_custom_call.1} parent=27 // pred_region
          %s346 = ssub.s32 128, 128
          %347 = vsyncadd %s338, %s346
          %s348 = smul.addr %s23, 128
          %s349 = scalar_lea.hbm %s2, %s348
          %s351 = sshll.u32 %s341, 4
          %s352 = int_to_ptr.vmem [resolvable:$true] %s351
          %354 = dma.vmem_to_hbm [thread:$0]  %s352, 128, %s349, %s338
        $region44: #{tpu_custom_call.1} parent=27 // pred_fallthru
          _
      $region28: #{tpu_custom_call.1} parent=5 // pred_fallthru
        _
      %p355 = scmp.le.s32.totalorder 2, %s14
      // Predicated region
      $region45: #{tpu_custom_call.1} parent=5 // pred_check
        %p356 = pneg %p355
      $region46: #{tpu_custom_call.1} parent=5 // pred_check_branch
        %358 = sbr.rel (%p356) target = $region48
      $region47: #{tpu_custom_call.1} parent=5 // pred_region
        %s359 = ssub.s32 %s14, 2
        // Predicated region
        $region49: #{tpu_custom_call.1} parent=47 // pred_check
          %p360 = pneg %p109
        $region50: #{tpu_custom_call.1} parent=47 // pred_check_branch
          %362 = sbr.rel (%p360) target = $region52
        $region51: #{tpu_custom_call.1} parent=47 // pred_region
          %s363 = sand.u32 %s94, 1
          %s364 = scalar_lea.sflag [#allocation5], %s363
          %s365 = sand.u32 %s94, 1
          %s366 = smul.addr %s365, 8
          %s367 = scalar_lea.vmem [#allocation6], %s366
          %368 = dma.done %s364, 128
        $region52: #{tpu_custom_call.1} parent=47 // pred_fallthru
          _
      $region48: #{tpu_custom_call.1} parent=5 // pred_fallthru
        _
    $region6: #{tpu_custom_call.1} parent=1 // loop_footer
      %s18 = sadd.s32 1, %s14
    $region7: #{tpu_custom_call.1} parent=1 // loop_footer_branch
      %13 = sbr.rel target = $region3
    $region8: #{tpu_custom_call.1} parent=1 // loop_exit
      _
    %369 = vsyncpa [#allocation4], 1
    %s370 = scalar_lea.sflag [#allocation4], 1
    %371 = vsyncpa %s370, 1
    %372 = vsyncpa [#allocation5], 1
    %s373 = scalar_lea.sflag [#allocation5], 1
    %374 = vsyncpa %s373, 1

</llo_original>
